<compile_context>
chip_gen: v6e
topology: v6e:2x2x1
jax: 0.10.0
libtpu: 0.0.40
codegen_flags: <defaults>
</compile_context>

<pallas_src>
import functools

import jax
import jax.numpy as jnp
from jax import lax
from jax.experimental import pallas as pl
from jax.experimental.pallas import tpu as pltpu


def _head_kernel(q_ref, qm_ref, v_ref, vm_ref, w_ref, o_ref):
    """One batch-tile per grid step.

    q_ref : (Bt, Lq, Dp)  bf16 query tokens, pre-scaled by 1/sqrt(D)
    qm_ref: (Bt, Lq, 1)   f32 query mask (1.0 = valid, 0.0 = pad)
    v_ref : (Bt, Lv, Dp)  bf16 video tokens
    vm_ref: (Bt, 1,  Lv)  f32 video mask
    w_ref : (Dp, Dp)      bf16 output projection (zero-padded)
    o_ref : (Bt, Lq, Dp)  f32 output (lane-dense, Dp multiple of 128)
    """
    bt, lq, dp = q_ref.shape

    q = q_ref[...]                      # (Bt, Lq, Dp) bf16
    v = v_ref[...]                      # (Bt, Lv, Dp) bf16
    qm = qm_ref[...]                    # (Bt, Lq, 1)  f32
    vm = vm_ref[...]                    # (Bt, 1,  Lv) f32

    # scores = (Q K^T) (scale already folded into q); contract last dims so the
    # MXU is fed directly -- no materialized transpose of V.
    s = lax.dot_general(
        q, v,
        dimension_numbers=(((2,), (2,)), ((0,), (0,))),
        preferred_element_type=jnp.float32)          # (Bt, Lq, Lv) f32
    s = jnp.where(vm > 0.0, s, jnp.float32(-1e30))   # mask invalid video posns

    # numerically-stable softmax over the video axis (f32).
    m = jnp.max(s, axis=-1, keepdims=True)
    p = jnp.exp(s - m)
    denom = jnp.sum(p, axis=-1, keepdims=True)
    inv = pl.reciprocal(denom, approx=True)          # EUP slot, ~free
    attn = (p * inv).astype(v.dtype)                 # (Bt, Lq, Lv) bf16

    # context = attn @ V  (batched over the batch-tile).
    ctx = lax.dot_general(
        attn, v,
        dimension_numbers=(((2,), (1,)), ((0,), (0,))),
        preferred_element_type=jnp.float32)          # (Bt, Lq, Dp) f32

    # Output projection: flatten the batch-tile into rows so the MXU sees one
    # (Bt*Lq, Dp) @ (Dp, Dp) matmul instead of Bt tiny ones.
    ctx2 = ctx.astype(w_ref.dtype).reshape(bt * lq, dp)
    out = jnp.dot(ctx2, w_ref[...],
                  preferred_element_type=jnp.float32)  # (Bt*Lq, Dp) f32
    out = out.reshape(bt, lq, dp) * qm               # zero padded query rows

    o_ref[...] = out.astype(o_ref.dtype)


def _round_up(x, m):
    return (x + m - 1) // m * m


def _choose_batch_tile(B, Lq, Lv, Dp):
    """Largest divisor of B giving >=~256 MXU rows/step within a VMEM budget."""
    target_rows = 256
    bt_rows_cap = max(1, target_rows // max(Lq, 1))
    # double-buffered q/v (bf16) + f32 output block per batch element
    bytes_per_b = 2 * (Lq * Dp * 2 + Lv * Dp * 2 + Lq * Dp * 4)
    bt_vmem_cap = max(1, (4 << 20) // max(bytes_per_b, 1))  # ~4 MiB working set
    cap = min(B, bt_rows_cap, bt_vmem_cap)
    bt = 1
    for d in range(1, cap + 1):
        if B % d == 0:
            bt = d
    return bt


def _cross_attention_head(query, query_mask, video, video_mask,
                          epoch_i=None, idx=None, save_dir=None, scope='Train',
                          *, w_out):
    """Pallas-backed synthetic head: head(query, query_mask, video, video_mask, ...)."""
    # epoch_i / idx / save_dir / scope are logging-only args in the reference
    # interface; they are accepted but unused.
    B, Lq, D = query.shape
    _, Lv, _ = video.shape

    Dp = _round_up(max(D, 128), 128)        # lane-dense padded hidden dim
    pad_d = Dp - D
    scale = 1.0 / float(D) ** 0.5

    # Pre-scale q by 1/sqrt(D) (fuses with the pad/cast), zero-pad the hidden
    # dim, and cast matmul inputs to bf16 (f32 accumulation in the kernel).
    q = jnp.pad(query.astype(jnp.float32) * scale,
                ((0, 0), (0, 0), (0, pad_d))).astype(jnp.bfloat16)
    v = jnp.pad(video.astype(jnp.float32),
                ((0, 0), (0, 0), (0, pad_d))).astype(jnp.bfloat16)
    w = jnp.pad(w_out.astype(jnp.float32),
                ((0, pad_d), (0, pad_d))).astype(jnp.bfloat16)

    qm = query_mask.astype(jnp.float32).reshape(B, Lq, 1)   # VPU lane-broadcast
    vm = video_mask.astype(jnp.float32).reshape(B, 1, Lv)   # lane-axis mask

    Bt = _choose_batch_tile(B, Lq, Lv, Dp)
    grid = (B // Bt,)

    out_padded = pl.pallas_call(
        _head_kernel,
        out_shape=jax.ShapeDtypeStruct((B, Lq, Dp), jnp.float32),
        grid=grid,
        in_specs=[
            pl.BlockSpec((Bt, Lq, Dp), lambda b: (b, 0, 0)),   # query
            pl.BlockSpec((Bt, Lq, 1), lambda b: (b, 0, 0)),    # query_mask
            pl.BlockSpec((Bt, Lv, Dp), lambda b: (b, 0, 0)),   # video
            pl.BlockSpec((Bt, 1, Lv), lambda b: (b, 0, 0)),    # video_mask
            pl.BlockSpec((Dp, Dp), lambda b: (0, 0)),          # projection
        ],
        out_specs=pl.BlockSpec((Bt, Lq, Dp), lambda b: (b, 0, 0)),
        compiler_params=pltpu.CompilerParams(
            dimension_semantics=("parallel",)),                # v7x: 2 TCs split batch
    )(q, qm, v, vm, w)

    return out_padded[:, :, :D]


class MEME:
    """Faithful port of the PyTorch MEME wrapper: forwards/reorders args to `head`."""

    def __init__(self, head):
        self.head = head

    def __call__(self, video, query, video_mask=None, query_mask=None,
                 epoch_i=None, idx=None, save_dir=None, scope='Train'):
        # Matches: outputs = self.head(query, query_mask, video, video_mask,
        #                              epoch_i, idx, save_dir, scope)
        outputs = self.head(query, query_mask, video, video_mask,
                            epoch_i, idx, save_dir, scope)
        return outputs


if __name__ == "__main__":
    key = jax.random.PRNGKey(0)
    k_q, k_v, k_w = jax.random.split(key, 3)

    B, Lq, Lv, D = 2, 8, 16, 32

    query = jax.random.normal(k_q, (B, Lq, D), dtype=jnp.float32)
    video = jax.random.normal(k_v, (B, Lv, D), dtype=jnp.float32)

    # Deterministic masks: second batch element has padded tails.
    query_mask = jnp.ones((B, Lq), dtype=jnp.float32).at[1, Lq - 2:].set(0.0)
    video_mask = jnp.ones((B, Lv), dtype=jnp.float32).at[1, Lv - 4:].set(0.0)

    # Deterministic parameter for the synthetic head (output projection D x D).
    w_out = jax.random.normal(k_w, (D, D), dtype=jnp.float32) * (1.0 / D ** 0.5)

    head = functools.partial(_cross_attention_head, w_out=w_out)
    model = MEME(head)

    out = model(video, query, video_mask=video_mask, query_mask=query_mask)
    out = jax.block_until_ready(out)

    # Sanity check vs a pure-JAX f32 reference of the same head (kernel uses
    # bf16 matmul inputs with f32 accumulation, hence the relaxed tolerance).
    def ref_head(q, qm, v, vm, w):
        s = jnp.einsum('bqd,bkd->bqk', q, v) / (D ** 0.5)
        s = jnp.where(vm[:, None, :] > 0.0, s, -1e30)
        a = jax.nn.softmax(s, axis=-1)
        o = jnp.einsum('bqk,bkd->bqd', a, v) @ w
        return o * qm[:, :, None]

    ref = ref_head(query, query_mask, video, video_mask, w_out)
    assert out.shape == (B, Lq, D)
    max_err = float(jnp.max(jnp.abs(out - ref)))
    assert jnp.allclose(out, ref, atol=5e-2, rtol=5e-2), max_err

    print("KERNEL_OK")
</pallas_src>

<mosaic_0001>
module attributes {stable_mosaic.version = 11 : i64} {
  func.func @_head_kernel(%arg0: i32, %arg1: memref<2x8x128xbf16, #tpu.memory_space<vmem>>, %arg2: memref<2x8x1xf32, #tpu.memory_space<vmem>>, %arg3: memref<2x16x128xbf16, #tpu.memory_space<vmem>>, %arg4: memref<2x1x16xf32, #tpu.memory_space<vmem>>, %arg5: memref<128x128xbf16, #tpu.memory_space<vmem>>, %arg6: memref<2x8x128xf32, #tpu.memory_space<vmem>>) attributes {dimension_semantics = [#tpu.dimension_semantics<parallel>], iteration_bounds = array<i64: 1>, scalar_prefetch = 0 : i64, scratch_operands = 0 : i64, tpu.core_type = #tpu.core_type<tc>, window_params = [{transform_indices = @transform_0, window_bounds = array<i64: 2, 8, 128>}, {transform_indices = @transform_1, window_bounds = array<i64: 2, 8, 1>}, {transform_indices = @transform_2, window_bounds = array<i64: 2, 16, 128>}, {transform_indices = @transform_3, window_bounds = array<i64: 2, 1, 16>}, {pipeline_mode = #tpu.pipeline_mode<synchronous>, transform_indices = @transform_4, window_bounds = array<i64: 128, 128>}, {transform_indices = @transform_5, window_bounds = array<i64: 2, 8, 128>}]} {
    %c0 = arith.constant 0 : index
    %c0_0 = arith.constant 0 : index
    %c0_1 = arith.constant 0 : index
    %0 = vector.load %arg1[%c0, %c0_0, %c0_1] : memref<2x8x128xbf16, #tpu.memory_space<vmem>>, vector<2x8x128xbf16>
    %c0_2 = arith.constant 0 : index
    %c0_3 = arith.constant 0 : index
    %c0_4 = arith.constant 0 : index
    %1 = vector.load %arg3[%c0_2, %c0_3, %c0_4] : memref<2x16x128xbf16, #tpu.memory_space<vmem>>, vector<2x16x128xbf16>
    %c0_5 = arith.constant 0 : index
    %c0_6 = arith.constant 0 : index
    %c0_7 = arith.constant 0 : index
    %2 = vector.load %arg2[%c0_5, %c0_6, %c0_7] : memref<2x8x1xf32, #tpu.memory_space<vmem>>, vector<2x8x1xf32>
    %c0_8 = arith.constant 0 : index
    %c0_9 = arith.constant 0 : index
    %c0_10 = arith.constant 0 : index
    %3 = vector.load %arg4[%c0_8, %c0_9, %c0_10] : memref<2x1x16xf32, #tpu.memory_space<vmem>>, vector<2x1x16xf32>
    %cst = arith.constant dense<0.000000e+00> : vector<2x8x16xf32>
    %4 = tpu.matmul %0, %1, %cst {dimension_numbers = #tpu.dot_dimension_numbers<[2], [2], [1], [1], [0, 0, 0, 1, 1, 1], [0], [0]>} : vector<2x8x128xbf16>, vector<2x16x128xbf16>, vector<2x8x16xf32> -> vector<2x8x16xf32>
    %cst_11 = arith.constant 0.000000e+00 : f32
    %5 = vector.broadcast %cst_11 : f32 to vector<2x1x16xf32>
    %6 = arith.cmpf ogt, %3, %5 : vector<2x1x16xf32>
    %cst_12 = arith.constant -1.000000e+30 : f32
    %7 = vector.shape_cast %6 : vector<2x1x16xi1> to vector<2x1x16xi1>
    %8 = vector.broadcast %7 : vector<2x1x16xi1> to vector<2x8x16xi1>
    %9 = vector.broadcast %cst_12 : f32 to vector<2x8x16xf32>
    %10 = arith.select %8, %4, %9 : vector<2x8x16xi1>, vector<2x8x16xf32>
    %cst_13 = arith.constant dense<0xFF800000> : vector<2x8xf32>
    %11 = vector.multi_reduction <maximumf>, %10, %cst_13 [2] : vector<2x8x16xf32> to vector<2x8xf32>
    %12 = vector.shape_cast %11 : vector<2x8xf32> to vector<2x8x1xf32>
    %13 = vector.broadcast %12 : vector<2x8x1xf32> to vector<2x8x16xf32>
    %14 = arith.subf %10, %13 : vector<2x8x16xf32>
    %15 = math.exp %14 : vector<2x8x16xf32>
    %cst_14 = arith.constant dense<0.000000e+00> : vector<2x8xf32>
    %16 = vector.multi_reduction <add>, %15, %cst_14 [2] : vector<2x8x16xf32> to vector<2x8xf32>
    %17 = vector.shape_cast %16 : vector<2x8xf32> to vector<2x8x1xf32>
    %18 = tpu.reciprocal %17 {approx = true} : vector<2x8x1xf32> -> vector<2x8x1xf32>
    %19 = vector.broadcast %18 : vector<2x8x1xf32> to vector<2x8x16xf32>
    %20 = arith.mulf %15, %19 : vector<2x8x16xf32>
    %21 = arith.truncf %20 : vector<2x8x16xf32> to vector<2x8x16xbf16>
    %cst_15 = arith.constant dense<0.000000e+00> : vector<2x8x128xf32>
    %22 = tpu.matmul %21, %1, %cst_15 {dimension_numbers = #tpu.dot_dimension_numbers<[2], [1], [1], [2], [0, 0, 0, 1, 1, 2], [0], [0]>} : vector<2x8x16xbf16>, vector<2x16x128xbf16>, vector<2x8x128xf32> -> vector<2x8x128xf32>
    %23 = arith.truncf %22 : vector<2x8x128xf32> to vector<2x8x128xbf16>
    %24 = vector.shape_cast %23 : vector<2x8x128xbf16> to vector<16x128xbf16>
    %c0_16 = arith.constant 0 : index
    %c0_17 = arith.constant 0 : index
    %25 = vector.load %arg5[%c0_16, %c0_17] : memref<128x128xbf16, #tpu.memory_space<vmem>>, vector<128x128xbf16>
    %cst_18 = arith.constant dense<0.000000e+00> : vector<16x128xf32>
    %26 = tpu.matmul %24, %25, %cst_18 {dimension_numbers = #tpu.dot_dimension_numbers<[1], [0], [0], [1], [0, 0, 1, 1], [], []>} : vector<16x128xbf16>, vector<128x128xbf16>, vector<16x128xf32> -> vector<16x128xf32>
    %27 = vector.shape_cast %26 : vector<16x128xf32> to vector<2x8x128xf32>
    %28 = vector.broadcast %2 : vector<2x8x1xf32> to vector<2x8x128xf32>
    %29 = arith.mulf %27, %28 : vector<2x8x128xf32>
    %c0_19 = arith.constant 0 : index
    %c0_20 = arith.constant 0 : index
    %c0_21 = arith.constant 0 : index
    %30 = vector.load %arg6[%c0_19, %c0_20, %c0_21] : memref<2x8x128xf32, #tpu.memory_space<vmem>>, vector<2x8x128xf32>
    tpu.vector_store %arg6[%c0_19, %c0_20, %c0_21], %29 {strides = array<i32>} : memref<2x8x128xf32, #tpu.memory_space<vmem>>, vector<2x8x128xf32>,
    return
  }
  func.func @transform_0(%arg0: i32) -> (i32, i32, i32) {
    %c0_i32 = arith.constant 0 : i32
    %c0_i32_0 = arith.constant 0 : i32
    %c0_i32_1 = arith.constant 0 : i32
    return %arg0, %c0_i32, %c0_i32_0 : i32, i32, i32
  }
  func.func @transform_1(%arg0: i32) -> (i32, i32, i32) {
    %c0_i32 = arith.constant 0 : i32
    %c0_i32_0 = arith.constant 0 : i32
    %c0_i32_1 = arith.constant 0 : i32
    return %arg0, %c0_i32, %c0_i32_0 : i32, i32, i32
  }
  func.func @transform_2(%arg0: i32) -> (i32, i32, i32) {
    %c0_i32 = arith.constant 0 : i32
    %c0_i32_0 = arith.constant 0 : i32
    %c0_i32_1 = arith.constant 0 : i32
    return %arg0, %c0_i32, %c0_i32_0 : i32, i32, i32
  }
  func.func @transform_3(%arg0: i32) -> (i32, i32, i32) {
    %c0_i32 = arith.constant 0 : i32
    %c0_i32_0 = arith.constant 0 : i32
    %c0_i32_1 = arith.constant 0 : i32
    return %arg0, %c0_i32, %c0_i32_0 : i32, i32, i32
  }
  func.func @transform_4(%arg0: i32) -> (i32, i32) {
    %c0_i32 = arith.constant 0 : i32
    %c0_i32_0 = arith.constant 0 : i32
    %c0_i32_1 = arith.constant 0 : i32
    return %c0_i32, %c0_i32_0 : i32, i32
  }
  func.func @transform_5(%arg0: i32) -> (i32, i32, i32) {
    %c0_i32 = arith.constant 0 : i32
    %c0_i32_0 = arith.constant 0 : i32
    %c0_i32_1 = arith.constant 0 : i32
    return %arg0, %c0_i32, %c0_i32_0 : i32, i32, i32
  }
}

</mosaic_0001>

<llo_original>
// kernel: tpu_custom_call.1
$region0: #{tpu_custom_call.1}
  #allocation0 [shape = 'u32[]', space=smem, size = 0x4, offset = 0x4, fixed_abs, tag = 'smem constant byte address 0x4 - core index']
  #allocation1 [shape = 'u32[144,128]{1,0:T(1,128)}', space=vmem, size = 0x12000, scoped, tag = 'internal scratch']
  %s0 = inlined_call_operand.hbm [shape: bf16[2,8,128], index: 0, kind: input, shape index: {}]
  %s1 = inlined_call_operand.vmem [shape: f32[2,8,1], index: 1, kind: input, shape index: {}]
  %s2 = inlined_call_operand.vmem [shape: bf16[2,16,128], index: 2, kind: input, shape index: {}]
  %s3 = inlined_call_operand.vmem [shape: f32[2,1,16], index: 3, kind: input, shape index: {}]
  %s4 = inlined_call_operand.hbm [shape: bf16[128,128], index: 4, kind: input, shape index: {}]
  %s5 = inlined_call_operand.hbm [shape: f32[2,8,128], index: 5, kind: output, shape index: {}]
  %s6 = sld [smem:[#allocation0]]
  $region38: #{tpu_custom_call.1} parent=0
    _
  %s8 = ssub.s32 1, %s6
  %s9 = scalar_select 0, %s8, %s6
  $region1: #{tpu_custom_call.1} parent=0
    #allocation2 [shape = 'u8[4096]{0}', space=vmem, size = 0x1000, scoped, tag = 'input window, operand 0, single buffered']
    #allocation3 [shape = 's32[1]{0}', space=sflag, size = 0x4, scoped, tag = 'scoped memory for tpu_custom_call.1']
    #allocation4 [shape = 's32[1]{0}', space=sflag, size = 0x4, scoped, tag = 'scoped memory for tpu_custom_call.1']
    #allocation5 [shape = 'u8[32768]{0}', space=vmem, size = 0x8000, scoped, tag = 'input window, operand 4, single buffered']
    #allocation6 [shape = 's32[1]{0}', space=sflag, size = 0x4, scoped, tag = 'scoped memory for tpu_custom_call.1']
    #allocation7 [shape = 'u8[8192]{0}', space=vmem, size = 0x2000, scoped, tag = 'output window, operand 0, single buffered']
    %10 = vsyncpa [#allocation3], 0
    %11 = vsyncpa [#allocation6], 0
    %12 = vsyncpa [#allocation4], 0
    // Predicated region
    $region2: #{tpu_custom_call.1} parent=1 // pred_check
      _
    $region3: #{tpu_custom_call.1} parent=1 // pred_check_branch
      %14 = sbr.rel (0) target = $region5
    $region4: #{tpu_custom_call.1} parent=1 // pred_region
      %s16 = ssub.s32 128, 128
      %17 = vsyncadd [#allocation3], %s16
      %s18 = sshll.u32 [#allocation2], 4
      %s19 = int_to_ptr.vmem [resolvable:$true] %s18
      %24 = dma.hbm_to_vmem [thread:$0]  %s0, 128, %s19, [#allocation3], 64, 64, 4
    $region5: #{tpu_custom_call.1} parent=1 // pred_fallthru
      _
    // Predicated region
    $region6: #{tpu_custom_call.1} parent=1 // pred_check
      _
    $region7: #{tpu_custom_call.1} parent=1 // pred_check_branch
      %26 = sbr.rel (0) target = $region9
    $region8: #{tpu_custom_call.1} parent=1 // pred_region
      _
    $region9: #{tpu_custom_call.1} parent=1 // pred_fallthru
      _
    // Predicated region
    $region10: #{tpu_custom_call.1} parent=1 // pred_check
      _
    $region11: #{tpu_custom_call.1} parent=1 // pred_check_branch
      %28 = sbr.rel (0) target = $region13
    $region12: #{tpu_custom_call.1} parent=1 // pred_region
      _
    $region13: #{tpu_custom_call.1} parent=1 // pred_fallthru
      _
    // Predicated region
    $region14: #{tpu_custom_call.1} parent=1 // pred_check
      _
    $region15: #{tpu_custom_call.1} parent=1 // pred_check_branch
      %30 = sbr.rel (0) target = $region17
    $region16: #{tpu_custom_call.1} parent=1 // pred_region
      _
    $region17: #{tpu_custom_call.1} parent=1 // pred_fallthru
      _
    // Predicated region
    $region18: #{tpu_custom_call.1} parent=1 // pred_check
      _
    $region19: #{tpu_custom_call.1} parent=1 // pred_check_branch
      %32 = sbr.rel (0) target = $region21
    $region20: #{tpu_custom_call.1} parent=1 // pred_region
      %s34 = ssub.s32 1024, 1024
      %35 = vsyncadd [#allocation6], %s34
      %s36 = sshll.u32 [#allocation5], 4
      %s37 = int_to_ptr.vmem [resolvable:$true] %s36
      %42 = dma.hbm_to_vmem [thread:$0]  %s4, 1024, %s37, [#allocation6], 64, 64, 4
    $region21: #{tpu_custom_call.1} parent=1 // pred_fallthru
      _
    // Predicated region
    $region22: #{tpu_custom_call.1} parent=1 // pred_check
      _
    $region23: #{tpu_custom_call.1} parent=1 // pred_check_branch
      %44 = sbr.rel (0) target = $region25
    $region24: #{tpu_custom_call.1} parent=1 // pred_region
      %45 = dma.done [#allocation3], 128
    $region25: #{tpu_custom_call.1} parent=1 // pred_fallthru
      _
    // Predicated region
    $region26: #{tpu_custom_call.1} parent=1 // pred_check
      _
    $region27: #{tpu_custom_call.1} parent=1 // pred_check_branch
      %47 = sbr.rel (0) target = $region29
    $region28: #{tpu_custom_call.1} parent=1 // pred_region
      %48 = dma.done [#allocation6], 1024
    $region29: #{tpu_custom_call.1} parent=1 // pred_fallthru
      _
    %v50 = vld [vmem:[#allocation2] sm:$0xf]
    %v51 = vld [vmem:[#allocation2 + $0x4] sm:$0xf]
    %v52 = vld [vmem:[%s2] sm:$0xf]
    %v53 = vld [vmem:[%s2 + $0x4] sm:$0xf]
    %v54 = vld [vmem:[%s2 + $0x8] sm:$0xf]
    %v55 = vld [vmem:[%s2 + $0xc] sm:$0xf]
    %v56 = vld [vmem:[%s1] sm:$0xff]
    %v57 = vld [vmem:[%s1 + $0x8] sm:$0xff]
    %v58 = vld [vmem:[%s3] sm:$0x1]
    %v59 = vld [vmem:[%s3 + $0x1] sm:$0x1]
    %v62 = vunpack.c.l.b16 %v52
    %v63 = vunpack.c.l.b16 %v53
    %v64 = vpack.c.b16 %v63, %v62
    %66 = vmatprep.subr.bf16.mxu0 0
    %67 = vmatpush1.bf16.xpose.msra.mxu0 0
    %68 = vmatprep.subr.bf16.mxu0 0
    %69 = vmatpush1.bf16.xpose.msra.mxu0 0
    %70 = vmatprep.subr.bf16.mxu0 0
    %71 = vmatpush1.bf16.xpose.msra.mxu0 0
    %72 = vmatprep.subr.bf16.mxu0 0
    %73 = vmatpush1.bf16.xpose.msra.mxu0 0
    %74 = vmatprep.subr.bf16.mxu0 0
    %75 = vmatpush1.bf16.xpose.msra.mxu0 0
    %76 = vmatprep.subr.bf16.mxu0 0
    %77 = vmatpush1.bf16.xpose.msra.mxu0 0
    %78 = vmatprep.subr.bf16.mxu0 0
    %79 = vmatpush1.bf16.xpose.msra.mxu0 0
    %80 = vmatprep.subr.bf16.mxu0 0
    %81 = vmatpush1.bf16.xpose.msra.mxu0 %v64
    %82 = vmatprep.subr.bf16.mxu0 0
    %83 = vmatpush2.bf16.xpose.msra.mxu0 0
    %84 = vmatprep.subr.bf16.mxu0 0
    %85 = vmatpush2.bf16.xpose.msra.mxu0 0
    %86 = vmatprep.subr.bf16.mxu0 0
    %87 = vmatpush2.bf16.xpose.msra.mxu0 0
    %88 = vmatprep.subr.bf16.mxu0 0
    %89 = vmatpush2.bf16.xpose.msra.mxu0 0
    %90 = vmatprep.subr.bf16.mxu0 0
    %91 = vmatpush2.bf16.xpose.msra.mxu0 0
    %92 = vmatprep.subr.bf16.mxu0 0
    %93 = vmatpush2.bf16.xpose.msra.mxu0 0
    %94 = vmatprep.subr.bf16.mxu0 0
    %95 = vmatpush2.bf16.xpose.msra.mxu0 0
    %96 = vmatprep.subr.bf16.mxu0 0
    %97 = vmatpush2.bf16.xpose.msra.mxu0 0
    %98 = vmatprep.mubr.bf16.mxu0 0
    %99 = vmatmul.mubr.bf16.gmra.mxu0 %v50
    %v100 = vpop.f32.mrf.mxu0
    %v101 = vadd.f32 0.0, %v100
    %v102 = vpop.f32.mrf.mxu0
    %v103 = vpop.f32.mrf.mxu0
    %v104 = vpop.f32.mrf.mxu0
    %105 = vdwg.mxu0
    %v108 = vunpack.c.l.b16 %v54
    %v109 = vunpack.c.l.b16 %v55
    %v110 = vpack.c.b16 %v109, %v108
    %112 = vmatprep.subr.bf16.mxu0 0
    %113 = vmatpush1.bf16.xpose.msra.mxu0 0
    %114 = vmatprep.subr.bf16.mxu0 0
    %115 = vmatpush1.bf16.xpose.msra.mxu0 0
    %116 = vmatprep.subr.bf16.mxu0 0
    %117 = vmatpush1.bf16.xpose.msra.mxu0 0
    %118 = vmatprep.subr.bf16.mxu0 0
    %119 = vmatpush1.bf16.xpose.msra.mxu0 0
    %120 = vmatprep.subr.bf16.mxu0 0
    %121 = vmatpush1.bf16.xpose.msra.mxu0 0
    %122 = vmatprep.subr.bf16.mxu0 0
    %123 = vmatpush1.bf16.xpose.msra.mxu0 0
    %124 = vmatprep.subr.bf16.mxu0 0
    %125 = vmatpush1.bf16.xpose.msra.mxu0 0
    %126 = vmatprep.subr.bf16.mxu0 0
    %127 = vmatpush1.bf16.xpose.msra.mxu0 %v110
    %128 = vmatprep.subr.bf16.mxu0 0
    %129 = vmatpush2.bf16.xpose.msra.mxu0 0
    %130 = vmatprep.subr.bf16.mxu0 0
    %131 = vmatpush2.bf16.xpose.msra.mxu0 0
    %132 = vmatprep.subr.bf16.mxu0 0
    %133 = vmatpush2.bf16.xpose.msra.mxu0 0
    %134 = vmatprep.subr.bf16.mxu0 0
    %135 = vmatpush2.bf16.xpose.msra.mxu0 0
    %136 = vmatprep.subr.bf16.mxu0 0
    %137 = vmatpush2.bf16.xpose.msra.mxu0 0
    %138 = vmatprep.subr.bf16.mxu0 0
    %139 = vmatpush2.bf16.xpose.msra.mxu0 0
    %140 = vmatprep.subr.bf16.mxu0 0
    %141 = vmatpush2.bf16.xpose.msra.mxu0 0
    %142 = vmatprep.subr.bf16.mxu0 0
    %143 = vmatpush2.bf16.xpose.msra.mxu0 0
    %144 = vmatprep.mubr.bf16.mxu0 0
    %145 = vmatmul.mubr.bf16.gmra.mxu0 %v51
    %v146 = vpop.f32.mrf.mxu0
    %v147 = vadd.f32 0.0, %v146
    %v148 = vpop.f32.mrf.mxu0
    %v149 = vpop.f32.mrf.mxu0
    %v150 = vpop.f32.mrf.mxu0
    %151 = vdwg.mxu0
    %vm152 = vcmp.gt.f32.partialorder %v58, 0.0
    %vm153 = vcmp.gt.f32.partialorder %v59, 0.0
    %v154 = vsel %vm152, 1, 0
    %v155 = vsel %vm153, 1, 0
    %v156 = vlaneseq
    %v157 = vshrl.u32 %v156, 7
    %v158 = vsub.s32 0, %v157
    %v159 = vrot.slane %v154, %v158
    %v160 = vlaneseq
    %v161 = vshrl.u32 %v160, 7
    %v162 = vsub.s32 0, %v161
    %v163 = vrot.slane %v155, %v162
    %vm164 = vcmp.eq.s32.totalorder %v159, 1
    %vm165 = vcmp.eq.s32.totalorder %v163, 1
    %v166 = vsel %vm164, %v101, -1e+30
    %v167 = vsel %vm165, %v147, -1e+30
    %vm168 = vcmask 130048
    %v169 = vsel %vm168, %v166, -inf
    %170 = vmax.xlane.f32.xlu0 %v169
    %v171 = vpop.xlane.xlu0 %170
    %v172 = vsel %vm168, %v167, -inf
    %173 = vmax.xlane.f32.xlu0 %v172
    %v174 = vpop.xlane.xlu0 %173
    %v175 = vsub.f32 %v166, %v171
    %v176 = vsub.f32 %v167, %v174
    %v177 = vmul.f32 %v175, 1.442695
    %v178 = vpow.pop %v177
    %v179 = vmul.f32 %v176, 1.442695
    %v180 = vpow.pop %v179
    %v181 = vsel %vm168, %v178, 0.0
    %182 = vadd.xlane.f32.xlu0 %v181
    %v183 = vpop.xlane.xlu0 %182
    %v184 = vsel %vm168, %v180, 0.0
    %185 = vadd.xlane.f32.xlu0 %v184
    %v186 = vpop.xlane.xlu0 %185
    %v187 = vrcp.pop %v183
    %v188 = vrcp.pop %v186
    %v189 = vmul.f32 %v178, %v187
    %v190 = vmul.f32 %v180, %v188
    %v191 = vpack.c.bf16 %v189, %v189
    %v192 = vpack.c.bf16 %v190, %v190
    %v194 = vsel %vm168, %v191, 0
    %196 = vmatprep.subr.bf16.mxu0 0
    %197 = vmatpush1.bf16.msra.mxu0 0
    %198 = vmatprep.subr.bf16.mxu0 0
    %199 = vmatpush1.bf16.msra.mxu0 0
    %200 = vmatprep.subr.bf16.mxu0 0
    %201 = vmatpush1.bf16.msra.mxu0 0
    %202 = vmatprep.subr.bf16.mxu0 0
    %203 = vmatpush1.bf16.msra.mxu0 0
    %204 = vmatprep.subr.bf16.mxu0 0
    %205 = vmatpush1.bf16.msra.mxu0 0
    %206 = vmatprep.subr.bf16.mxu0 0
    %207 = vmatpush1.bf16.msra.mxu0 0
    %208 = vmatprep.subr.bf16.mxu0 0
    %209 = vmatpush1.bf16.msra.mxu0 0
    %210 = vmatprep.subr.bf16.mxu0 0
    %211 = vmatpush1.bf16.msra.mxu0 %v64
    %212 = vmatprep.subr.bf16.mxu0 0
    %213 = vmatpush2.bf16.msra.mxu0 0
    %214 = vmatprep.subr.bf16.mxu0 0
    %215 = vmatpush2.bf16.msra.mxu0 0
    %216 = vmatprep.subr.bf16.mxu0 0
    %217 = vmatpush2.bf16.msra.mxu0 0
    %218 = vmatprep.subr.bf16.mxu0 0
    %219 = vmatpush2.bf16.msra.mxu0 0
    %220 = vmatprep.subr.bf16.mxu0 0
    %221 = vmatpush2.bf16.msra.mxu0 0
    %222 = vmatprep.subr.bf16.mxu0 0
    %223 = vmatpush2.bf16.msra.mxu0 0
    %224 = vmatprep.subr.bf16.mxu0 0
    %225 = vmatpush2.bf16.msra.mxu0 0
    %226 = vmatprep.subr.bf16.mxu0 0
    %227 = vmatpush2.bf16.msra.mxu0 0
    %228 = vmatprep.mubr.bf16.mxu0 0
    %229 = vmatmul.mubr.bf16.gmra.mxu0 %v194
    %v230 = vpop.f32.mrf.mxu0
    %v231 = vadd.f32 0.0, %v230
    %v232 = vpop.f32.mrf.mxu0
    %v233 = vpop.f32.mrf.mxu0
    %v234 = vpop.f32.mrf.mxu0
    %235 = vdwg.mxu0
    %v237 = vsel %vm168, %v192, 0
    %239 = vmatprep.subr.bf16.mxu0 0
    %240 = vmatpush1.bf16.msra.mxu0 0
    %241 = vmatprep.subr.bf16.mxu0 0
    %242 = vmatpush1.bf16.msra.mxu0 0
    %243 = vmatprep.subr.bf16.mxu0 0
    %244 = vmatpush1.bf16.msra.mxu0 0
    %245 = vmatprep.subr.bf16.mxu0 0
    %246 = vmatpush1.bf16.msra.mxu0 0
    %247 = vmatprep.subr.bf16.mxu0 0
    %248 = vmatpush1.bf16.msra.mxu0 0
    %249 = vmatprep.subr.bf16.mxu0 0
    %250 = vmatpush1.bf16.msra.mxu0 0
    %251 = vmatprep.subr.bf16.mxu0 0
    %252 = vmatpush1.bf16.msra.mxu0 0
    %253 = vmatprep.subr.bf16.mxu0 0
    %254 = vmatpush1.bf16.msra.mxu0 %v110
    %255 = vmatprep.subr.bf16.mxu0 0
    %256 = vmatpush2.bf16.msra.mxu0 0
    %257 = vmatprep.subr.bf16.mxu0 0
    %258 = vmatpush2.bf16.msra.mxu0 0
    %259 = vmatprep.subr.bf16.mxu0 0
    %260 = vmatpush2.bf16.msra.mxu0 0
    %261 = vmatprep.subr.bf16.mxu0 0
    %262 = vmatpush2.bf16.msra.mxu0 0
    %263 = vmatprep.subr.bf16.mxu0 0
    %264 = vmatpush2.bf16.msra.mxu0 0
    %265 = vmatprep.subr.bf16.mxu0 0
    %266 = vmatpush2.bf16.msra.mxu0 0
    %267 = vmatprep.subr.bf16.mxu0 0
    %268 = vmatpush2.bf16.msra.mxu0 0
    %269 = vmatprep.subr.bf16.mxu0 0
    %270 = vmatpush2.bf16.msra.mxu0 0
    %271 = vmatprep.mubr.bf16.mxu0 0
    %272 = vmatmul.mubr.bf16.gmra.mxu0 %v237
    %v273 = vpop.f32.mrf.mxu0
    %v274 = vadd.f32 0.0, %v273
    %v275 = vpop.f32.mrf.mxu0
    %v276 = vpop.f32.mrf.mxu0
    %v277 = vpop.f32.mrf.mxu0
    %278 = vdwg.mxu0
    %v279 = vpack.c.bf16 %v231, %v231
    %v280 = vpack.c.bf16 %v274, %v274
    %v281 = vld [vmem:[#allocation5] sm:$0xf]
    %v282 = vld [vmem:[#allocation5 + $0x4] sm:$0xf]
    %v283 = vld [vmem:[#allocation5 + $0x8] sm:$0xf]
    %v284 = vld [vmem:[#allocation5 + $0xc] sm:$0xf]
    %v285 = vld [vmem:[#allocation5 + $0x10] sm:$0xf]
    %v286 = vld [vmem:[#allocation5 + $0x14] sm:$0xf]
    %v287 = vld [vmem:[#allocation5 + $0x18] sm:$0xf]
    %v288 = vld [vmem:[#allocation5 + $0x1c] sm:$0xf]
    %v289 = vld [vmem:[#allocation5 + $0x20] sm:$0xf]
    %v290 = vld [vmem:[#allocation5 + $0x24] sm:$0xf]
    %v291 = vld [vmem:[#allocation5 + $0x28] sm:$0xf]
    %v292 = vld [vmem:[#allocation5 + $0x2c] sm:$0xf]
    %v293 = vld [vmem:[#allocation5 + $0x30] sm:$0xf]
    %v294 = vld [vmem:[#allocation5 + $0x34] sm:$0xf]
    %v295 = vld [vmem:[#allocation5 + $0x38] sm:$0xf]
    %v296 = vld [vmem:[#allocation5 + $0x3c] sm:$0xf]
    %v299 = vunpack.c.l.b16 %v279
    %v300 = vunpack.c.l.b16 %v280
    %v301 = vpack.c.b16 %v300, %v299
    %v319 = vunpack.c.l.b16 %v281
    %v320 = vunpack.c.l.b16 %v282
    %v321 = vunpack.c.l.b16 %v283
    %v322 = vunpack.c.l.b16 %v284
    %v323 = vunpack.c.l.b16 %v285
    %v324 = vunpack.c.l.b16 %v286
    %v325 = vunpack.c.l.b16 %v287
    %v326 = vunpack.c.l.b16 %v288
    %v327 = vunpack.c.l.b16 %v289
    %v328 = vunpack.c.l.b16 %v290
    %v329 = vunpack.c.l.b16 %v291
    %v330 = vunpack.c.l.b16 %v292
    %v331 = vunpack.c.l.b16 %v293
    %v332 = vunpack.c.l.b16 %v294
    %v333 = vunpack.c.l.b16 %v295
    %v334 = vunpack.c.l.b16 %v296
    %v335 = vpack.c.b16 %v320, %v319
    %v336 = vpack.c.b16 %v322, %v321
    %v337 = vpack.c.b16 %v324, %v323
    %v338 = vpack.c.b16 %v326, %v325
    %v339 = vpack.c.b16 %v328, %v327
    %v340 = vpack.c.b16 %v330, %v329
    %v341 = vpack.c.b16 %v332, %v331
    %v342 = vpack.c.b16 %v334, %v333
    %351 = vmatprep.subr.bf16.mxu0 0
    %352 = vmatpush1.bf16.msra.mxu0 %v342
    %353 = vmatprep.subr.bf16.mxu0 0
    %354 = vmatpush1.bf16.msra.mxu0 %v341
    %355 = vmatprep.subr.bf16.mxu0 0
    %356 = vmatpush1.bf16.msra.mxu0 %v340
    %357 = vmatprep.subr.bf16.mxu0 0
    %358 = vmatpush1.bf16.msra.mxu0 %v339
    %359 = vmatprep.subr.bf16.mxu0 0
    %360 = vmatpush1.bf16.msra.mxu0 %v338
    %361 = vmatprep.subr.bf16.mxu0 0
    %362 = vmatpush1.bf16.msra.mxu0 %v337
    %363 = vmatprep.subr.bf16.mxu0 0
    %364 = vmatpush1.bf16.msra.mxu0 %v336
    %365 = vmatprep.subr.bf16.mxu0 0
    %366 = vmatpush1.bf16.msra.mxu0 %v335
    %367 = vmatprep.subr.bf16.mxu0 0
    %368 = vmatpush2.bf16.msra.mxu0 0
    %369 = vmatprep.subr.bf16.mxu0 0
    %370 = vmatpush2.bf16.msra.mxu0 0
    %371 = vmatprep.subr.bf16.mxu0 0
    %372 = vmatpush2.bf16.msra.mxu0 0
    %373 = vmatprep.subr.bf16.mxu0 0
    %374 = vmatpush2.bf16.msra.mxu0 0
    %375 = vmatprep.subr.bf16.mxu0 0
    %376 = vmatpush2.bf16.msra.mxu0 0
    %377 = vmatprep.subr.bf16.mxu0 0
    %378 = vmatpush2.bf16.msra.mxu0 0
    %379 = vmatprep.subr.bf16.mxu0 0
    %380 = vmatpush2.bf16.msra.mxu0 0
    %381 = vmatprep.subr.bf16.mxu0 0
    %382 = vmatpush2.bf16.msra.mxu0 0
    %383 = vmatprep.mubr.bf16.mxu0 0
    %384 = vmatmul.mubr.bf16.gmra.mxu0 %v301
    %v385 = vpop.f32.mrf.mxu0
    %v386 = vadd.f32 0.0, %v385
    %v387 = vpop.f32.mrf.mxu0
    %v388 = vpop.f32.mrf.mxu0
    %v389 = vadd.f32 0.0, %v388
    %v390 = vpop.f32.mrf.mxu0
    %391 = vdwg.mxu0
    %393 = vset.pattern.permute.xlu0 0
    %394 = vperm.xlu0 %393, %v56
    %v395 = vpop.permute.xlu0 %394
    %398 = vset.pattern.permute.xlu0 0
    %399 = vperm.xlu0 %398, %v57
    %v400 = vpop.permute.xlu0 %399
    %v402 = vmul.f32 %v386, %v395
    %v403 = vmul.f32 %v389, %v400
    %404 = vst [vmem:[#allocation7] sm:$0xff] %v402
    %405 = vst [vmem:[#allocation7 + $0x8] sm:$0xff] %v403
    // Predicated region
    $region30: #{tpu_custom_call.1} parent=1 // pred_check
      _
    $region31: #{tpu_custom_call.1} parent=1 // pred_check_branch
      %407 = sbr.rel (0) target = $region33
    $region32: #{tpu_custom_call.1} parent=1 // pred_region
      %s409 = ssub.s32 256, 256
      %410 = vsyncadd [#allocation4], %s409
      %s411 = sshll.u32 [#allocation7], 4
      %s412 = int_to_ptr.vmem [resolvable:$true] %s411
      %417 = dma.vmem_to_hbm [thread:$0]  %s412, 256, %s5, [#allocation4], 128, 128, 8
    $region33: #{tpu_custom_call.1} parent=1 // pred_fallthru
      _
    // Predicated region
    $region34: #{tpu_custom_call.1} parent=1 // pred_check
      _
    $region35: #{tpu_custom_call.1} parent=1 // pred_check_branch
      %419 = sbr.rel (0) target = $region37
    $region36: #{tpu_custom_call.1} parent=1 // pred_region
      %420 = dma.done [#allocation4], 256
    $region37: #{tpu_custom_call.1} parent=1 // pred_fallthru
      _
    %421 = vsyncpa [#allocation3], 1
    %422 = vsyncpa [#allocation6], 1
    %423 = vsyncpa [#allocation4], 1

</llo_original>
